<compile_context>
chip_gen: v6e
topology: v6e:2x2x1
jax: 0.10.0
libtpu: 0.0.40
codegen_flags: <defaults>
</compile_context>

<pallas_src>
import math

import jax
import jax.numpy as jnp
from jax.experimental import pallas as pl
from jax.experimental.pallas import tpu as pltpu


def _round_up(a, b):
    return ((a + b - 1) // b) * b


def _deform_conv_kernel(cols_ref, wmat_ref, bias_ref, out_ref, acc_ref):
    # cols_ref : (TM, TK)  bf16   -- fused (trilinear-blended) im2col tile
    # wmat_ref : (TK, COp) bf16
    # bias_ref : (1, COp)  f32
    # out_ref  : (TM, COp) f32
    # acc_ref  : (TM, COp) f32 VMEM scratch (accumulates over the CK grid axis)
    k = pl.program_id(1)

    @pl.when(k == 0)
    def _():
        acc_ref[...] = jnp.zeros_like(acc_ref)

    acc_ref[...] += jnp.dot(cols_ref[...], wmat_ref[...],
                            preferred_element_type=jnp.float32)

    @pl.when(k == pl.num_programs(1) - 1)
    def _():
        out_ref[...] = acc_ref[...] + bias_ref[...]


def _prepare_im2col(x, offset, kshape, stride, padding, dilation, deformable_groups):
    """Sampling coords + trilinear gather/blend, fused into one (M, CK) slab."""
    N, Cin, D, H, W = x.shape
    kT, kH, kW = kshape
    sd, sh, sw = stride
    pdd, pdh, pdw = padding
    dd, dh, dw = dilation
    K = kT * kH * kW
    dg = deformable_groups
    Dout = (D + 2 * pdd - (dd * (kT - 1) + 1)) // sd + 1
    Hout = (H + 2 * pdh - (dh * (kH - 1) + 1)) // sh + 1
    Wout = (W + 2 * pdw - (dw * (kW - 1) + 1)) // sw + 1
    P = Dout * Hout * Wout

    kt = jnp.broadcast_to(jnp.arange(kT).reshape(kT, 1, 1), (kT, kH, kW)).reshape(K)
    kh = jnp.broadcast_to(jnp.arange(kH).reshape(1, kH, 1), (kT, kH, kW)).reshape(K)
    kw = jnp.broadcast_to(jnp.arange(kW).reshape(1, 1, kW), (kT, kH, kW)).reshape(K)

    do = jnp.arange(Dout).reshape(Dout, 1, 1)
    ho = jnp.arange(Hout).reshape(1, Hout, 1)
    wo = jnp.arange(Wout).reshape(1, 1, Wout)

    # base sampling positions: (K, Dout, Hout, Wout)
    base_d = (do * sd - pdd)[None] + (kt * dd)[:, None, None, None]
    base_h = (ho * sh - pdh)[None] + (kh * dh)[:, None, None, None]
    base_w = (wo * sw - pdw)[None] + (kw * dw)[:, None, None, None]

    # offsets, channel layout g*(3K) + 3*ki + {0:d, 1:h, 2:w}
    off = offset.reshape(N, dg, K, 3, Dout, Hout, Wout).astype(jnp.float32)
    pd_s = base_d[None, None].astype(jnp.float32) + off[:, :, :, 0]
    ph_s = base_h[None, None].astype(jnp.float32) + off[:, :, :, 1]
    pw_s = base_w[None, None].astype(jnp.float32) + off[:, :, :, 2]

    d0f = jnp.floor(pd_s); h0f = jnp.floor(ph_s); w0f = jnp.floor(pw_s)
    ld = pd_s - d0f; lh = ph_s - h0f; lw = pw_s - w0f
    d0 = d0f.astype(jnp.int32); h0 = h0f.astype(jnp.int32); w0 = w0f.astype(jnp.int32)

    x_flat = x.reshape(N, Cin, D * H * W).astype(jnp.float32)
    cpg = Cin // dg  # channels per deformable group

    # Accumulate the 8 trilinear corners directly into the fused im2col slab;
    # XLA fuses the gather with the weighted sum so only `cols` hits HBM.
    # TODO(synk): keeping x resident in VMEM and gathering inside the kernel
    # (scalar-prefetched indices + manual DMA / take on a VMEM ref) would
    # remove even this slab; the data-dependent gather stays in JAX glue here.
    cols = jnp.zeros((N, Cin, K, P), jnp.float32)
    for a in (0, 1):
        for b in (0, 1):
            for c in (0, 1):
                di = d0 + a; hi = h0 + b; wi = w0 + c
                valid = ((di >= 0) & (di < D) & (hi >= 0) & (hi < H)
                         & (wi >= 0) & (wi < W))
                wgt = ((ld if a else 1.0 - ld)
                       * (lh if b else 1.0 - lh)
                       * (lw if c else 1.0 - lw))
                wgt = jnp.where(valid, wgt, 0.0)                 # (N, dg, K, Do, Ho, Wo)
                dic = jnp.clip(di, 0, D - 1)
                hic = jnp.clip(hi, 0, H - 1)
                wic = jnp.clip(wi, 0, W - 1)
                flat = ((dic * H + hic) * W + wic).reshape(N, dg, K, P)
                idx = jnp.broadcast_to(flat[:, :, None], (N, dg, cpg, K, P))
                idx = idx.reshape(N, Cin, K * P)
                vals = jnp.take_along_axis(x_flat, idx, axis=2).reshape(N, Cin, K, P)
                wful = jnp.broadcast_to(
                    wgt.reshape(N, dg, 1, K, P), (N, dg, cpg, K, P)
                ).reshape(N, Cin, K, P)
                cols = cols + vals * wful

    # -> (M, Cin*K) with reduction ordering c*K + ki (matches weight reshape)
    cols = cols.transpose(0, 3, 1, 2).reshape(N * P, Cin * K)
    return cols, (Dout, Hout, Wout)


def deform_conv3d(x, offset, weight, bias, stride, padding, dilation=(1, 1, 1),
                  groups=1, deformable_groups=1, tm=512, tk=1024,
                  return_debug=False):
    assert groups == 1  # TODO(synk): grouped conv path not implemented (module default is groups=1)
    N, Cin, D, H, W = x.shape
    Cout, _, kT, kH, kW = weight.shape
    K = kT * kH * kW
    CK = Cin * K

    cols, (Dout, Hout, Wout) = _prepare_im2col(
        x, offset, (kT, kH, kW), stride, padding, dilation, deformable_groups)
    M = cols.shape[0]

    # Lane-dense / MXU-friendly padding: CK and Cout -> multiples of 128.
    CKp = _round_up(CK, 128)
    COp = _round_up(Cout, 128)
    tk = min(_round_up(tk, 128), CKp)

    # Tile the M axis; keep a few grid steps on the parallel axis (feeds both
    # v7x TensorCores) while staying a multiple of 8 sublanes.
    tm = min(tm, _round_up(M, 8))
    while tm > 128 and -(-M // tm) < 4:
        tm //= 2
    Mp = _round_up(M, tm)

    # Single fused slab: cast the MXU operand to bf16, pad once (M and CK).
    cols_p = jnp.pad(cols.astype(jnp.bfloat16), ((0, Mp - M), (0, CKp - CK)))
    wmat = weight.reshape(Cout, CK).T.astype(jnp.float32)             # (CK, Cout)
    wmat_p = jnp.pad(wmat, ((0, CKp - CK), (0, COp - Cout))).astype(jnp.bfloat16)
    bias_p = jnp.pad(bias.reshape(1, Cout).astype(jnp.float32),
                     ((0, 0), (0, COp - Cout)))

    out_p = pl.pallas_call(
        _deform_conv_kernel,
        out_shape=jax.ShapeDtypeStruct((Mp, COp), jnp.float32),
        grid_spec=pltpu.PrefetchScalarGridSpec(
            num_scalar_prefetch=0,
            grid=(Mp // tm, CKp // tk),
            in_specs=[
                pl.BlockSpec((tm, tk), lambda i, k: (i, k)),
                pl.BlockSpec((tk, COp), lambda i, k: (k, 0)),
                pl.BlockSpec((1, COp), lambda i, k: (0, 0)),
            ],
            out_specs=pl.BlockSpec((tm, COp), lambda i, k: (i, 0)),
            scratch_shapes=[pltpu.VMEM((tm, COp), jnp.float32)],
        ),
        compiler_params=pltpu.CompilerParams(
            dimension_semantics=("parallel", "arbitrary"),
            vmem_limit_bytes=32 * 1024 * 1024,   # explicit budget (v7x-safe)
        ),
    )(cols_p, wmat_p, bias_p)

    out = out_p[:M, :Cout]                                            # (M, Cout)
    P = Dout * Hout * Wout
    result = out.reshape(N, P, Cout).transpose(0, 2, 1).reshape(
        N, Cout, Dout, Hout, Wout)
    if return_debug:
        return result, (cols, wmat, bias_p[:, :Cout])
    return result


if __name__ == "__main__":
    # Module config (mirrors DeformConv.__init__): 3D deformable conv
    N, Cin, Cout = 2, 4, 8
    D, H, W = 4, 8, 8
    kT = kH = kW = 3
    stride = (1, 1, 1)
    padding = (1, 1, 1)
    dilation = (1, 1, 1)
    groups = 1
    deformable_groups = 1
    K = kT * kH * kW

    key = jax.random.PRNGKey(0)
    kx, koff, kwt, kb = jax.random.split(key, 4)

    # Deterministic parameter init matching reset_parameters():
    # kaiming_uniform_(a=sqrt(5)) -> bound = 1/sqrt(fan_in); bias uniform(+-1/sqrt(fan_in))
    fan_in = (Cin // groups) * K
    bound = 1.0 / math.sqrt(fan_in)
    weight = jax.random.uniform(kwt, (Cout, Cin // groups, kT, kH, kW),
                                jnp.float32, -bound, bound)
    bias = jax.random.uniform(kb, (Cout,), jnp.float32, -bound, bound)

    x = jax.random.normal(kx, (N, Cin, D, H, W), jnp.float32)
    Dout = (D + 2 * padding[0] - (dilation[0] * (kT - 1) + 1)) // stride[0] + 1
    Hout = (H + 2 * padding[1] - (dilation[1] * (kH - 1) + 1)) // stride[1] + 1
    Wout = (W + 2 * padding[2] - (dilation[2] * (kW - 1) + 1)) // stride[2] + 1
    offset = 0.5 * jax.random.normal(
        koff, (N, 3 * deformable_groups * K, Dout, Hout, Wout), jnp.float32)

    out, (cols, wmat, bias2) = deform_conv3d(
        x, offset, weight, bias, stride, padding, dilation, groups,
        deformable_groups, return_debug=True)
    out = jax.block_until_ready(out)

    # Pure-JAX sanity check of the kernel math on the same fused im2col slab,
    # with matched bf16 rounding of the MXU operands (f32 accumulation).
    cols_r = cols.astype(jnp.bfloat16).astype(jnp.float32)
    wmat_r = wmat.astype(jnp.bfloat16).astype(jnp.float32)
    ref = jnp.dot(cols_r, wmat_r, preferred_element_type=jnp.float32) + bias2
    ref = ref.reshape(N, Dout * Hout * Wout, Cout).transpose(0, 2, 1)
    ref = ref.reshape(N, Cout, Dout, Hout, Wout)
    assert out.shape == (N, Cout, Dout, Hout, Wout)
    assert jnp.allclose(out, ref, atol=2e-3, rtol=2e-3), float(jnp.abs(out - ref).max())

    print("KERNEL_OK")
</pallas_src>

<mosaic_0001>
module attributes {stable_mosaic.version = 11 : i64} {
  func.func @_deform_conv_kernel(%arg0: i32, %arg1: i32, %arg2: memref<128x128xbf16, #tpu.memory_space<vmem>>, %arg3: memref<128x128xbf16, #tpu.memory_space<vmem>>, %arg4: memref<1x128xf32, #tpu.memory_space<vmem>>, %arg5: memref<128x128xf32, #tpu.memory_space<vmem>>, %arg6: memref<128x128xf32, #tpu.memory_space<vmem>>) attributes {dimension_semantics = [#tpu.dimension_semantics<parallel>, #tpu.dimension_semantics<arbitrary>], iteration_bounds = array<i64: 4, 1>, scalar_prefetch = 0 : i64, scratch_operands = 1 : i64, tpu.core_type = #tpu.core_type<tc>, window_params = [{transform_indices = @transform_0, window_bounds = array<i64: 128, 128>}, {transform_indices = @transform_1, window_bounds = array<i64: 128, 128>}, {pipeline_mode = #tpu.pipeline_mode<synchronous>, transform_indices = @transform_2, window_bounds = array<i64: 1, 128>}, {transform_indices = @transform_3, window_bounds = array<i64: 128, 128>}]} {
    %c0_i32 = arith.constant 0 : i32
    %0 = arith.cmpi eq, %arg1, %c0_i32 : i32
    %1 = arith.extui %0 : i1 to i32
    %c0_i32_0 = arith.constant 0 : i32
    %2 = arith.cmpi ne, %1, %c0_i32_0 : i32
    scf.if %2 {
      %cst_10 = arith.constant 0.000000e+00 : f32
      %12 = vector.broadcast %cst_10 : f32 to vector<128x128xf32>
      %c0_11 = arith.constant 0 : index
      %c0_12 = arith.constant 0 : index
      %13 = vector.load %arg6[%c0_11, %c0_12] : memref<128x128xf32, #tpu.memory_space<vmem>>, vector<128x128xf32>
      tpu.vector_store %arg6[%c0_11, %c0_12], %12 {strides = array<i32>} : memref<128x128xf32, #tpu.memory_space<vmem>>, vector<128x128xf32>,
    } else {
    }
    %c0 = arith.constant 0 : index
    %c0_1 = arith.constant 0 : index
    %3 = vector.load %arg6[%c0, %c0_1] : memref<128x128xf32, #tpu.memory_space<vmem>>, vector<128x128xf32>
    %c0_2 = arith.constant 0 : index
    %c0_3 = arith.constant 0 : index
    %4 = vector.load %arg2[%c0_2, %c0_3] : memref<128x128xbf16, #tpu.memory_space<vmem>>, vector<128x128xbf16>
    %c0_4 = arith.constant 0 : index
    %c0_5 = arith.constant 0 : index
    %5 = vector.load %arg3[%c0_4, %c0_5] : memref<128x128xbf16, #tpu.memory_space<vmem>>, vector<128x128xbf16>
    %cst = arith.constant dense<0.000000e+00> : vector<128x128xf32>
    %6 = tpu.matmul %4, %5, %cst {dimension_numbers = #tpu.dot_dimension_numbers<[1], [0], [0], [1], [0, 0, 1, 1], [], []>} : vector<128x128xbf16>, vector<128x128xbf16>, vector<128x128xf32> -> vector<128x128xf32>
    %7 = arith.addf %3, %6 : vector<128x128xf32>
    %c0_6 = arith.constant 0 : index
    %c0_7 = arith.constant 0 : index
    %8 = vector.load %arg6[%c0_6, %c0_7] : memref<128x128xf32, #tpu.memory_space<vmem>>, vector<128x128xf32>
    tpu.vector_store %arg6[%c0_6, %c0_7], %7 {strides = array<i32>} : memref<128x128xf32, #tpu.memory_space<vmem>>, vector<128x128xf32>,
    %c0_i32_8 = arith.constant 0 : i32
    %9 = arith.cmpi eq, %arg1, %c0_i32_8 : i32
    %10 = arith.extui %9 : i1 to i32
    %c0_i32_9 = arith.constant 0 : i32
    %11 = arith.cmpi ne, %10, %c0_i32_9 : i32
    scf.if %11 {
      %c0_10 = arith.constant 0 : index
      %c0_11 = arith.constant 0 : index
      %12 = vector.load %arg6[%c0_10, %c0_11] : memref<128x128xf32, #tpu.memory_space<vmem>>, vector<128x128xf32>
      %c0_12 = arith.constant 0 : index
      %c0_13 = arith.constant 0 : index
      %13 = vector.load %arg4[%c0_12, %c0_13] : memref<1x128xf32, #tpu.memory_space<vmem>>, vector<1x128xf32>
      %14 = vector.broadcast %13 : vector<1x128xf32> to vector<128x128xf32>
      %15 = arith.addf %12, %14 : vector<128x128xf32>
      %c0_14 = arith.constant 0 : index
      %c0_15 = arith.constant 0 : index
      %16 = vector.load %arg5[%c0_14, %c0_15] : memref<128x128xf32, #tpu.memory_space<vmem>>, vector<128x128xf32>
      tpu.vector_store %arg5[%c0_14, %c0_15], %15 {strides = array<i32>} : memref<128x128xf32, #tpu.memory_space<vmem>>, vector<128x128xf32>,
    } else {
    }
    return
  }
  func.func @transform_0(%arg0: i32, %arg1: i32) -> (i32, i32) {
    %c0_i32 = arith.constant 0 : i32
    return %arg0, %arg1 : i32, i32
  }
  func.func @transform_1(%arg0: i32, %arg1: i32) -> (i32, i32) {
    %c0_i32 = arith.constant 0 : i32
    %c0_i32_0 = arith.constant 0 : i32
    return %arg1, %c0_i32 : i32, i32
  }
  func.func @transform_2(%arg0: i32, %arg1: i32) -> (i32, i32) {
    %c0_i32 = arith.constant 0 : i32
    %c0_i32_0 = arith.constant 0 : i32
    %c0_i32_1 = arith.constant 0 : i32
    return %c0_i32, %c0_i32_0 : i32, i32
  }
  func.func @transform_3(%arg0: i32, %arg1: i32) -> (i32, i32) {
    %c0_i32 = arith.constant 0 : i32
    %c0_i32_0 = arith.constant 0 : i32
    return %arg0, %c0_i32 : i32, i32
  }
}

</mosaic_0001>

<llo_original>
// kernel: tpu_custom_call.1
$region0: #{tpu_custom_call.1}
  #allocation0 [shape = 'u32[]', space=smem, size = 0x4, offset = 0x4, fixed_abs, tag = 'smem constant byte address 0x4 - core index']
  #allocation1 [shape = 'u32[144,128]{1,0:T(1,128)}', space=vmem, size = 0x12000, scoped, tag = 'internal scratch']
  #allocation2 [shape = 'f32[128,128]{1,0:T(8,128)}', space=vmem, size = 0x10000, scoped, tag = 'scratch operand']
  %s0 = inlined_call_operand.hbm [shape: bf16[512,128], index: 0, kind: input, shape index: {}]
  %s1 = inlined_call_operand.hbm [shape: bf16[128,128], index: 1, kind: input, shape index: {}]
  %s2 = inlined_call_operand.vmem [shape: f32[1,128], index: 2, kind: input, shape index: {}]
  %s3 = inlined_call_operand.hbm [shape: f32[512,128], index: 3, kind: output, shape index: {}]
  %s4 = sld [smem:[#allocation0]]
  $region61: #{tpu_custom_call.1} parent=0
    _
  %s6 = ssub.s32 1, %s4
  %s7 = scalar_select 0, %s6, %s4
  $region1: #{tpu_custom_call.1} parent=0
    #allocation3 [shape = 'u8[65536]{0}', space=vmem, size = 0x10000, scoped, tag = 'input window, operand 0']
    #allocation4 [shape = 's32[2]{0}', space=sflag, size = 0x8, scoped, tag = 'scoped memory for tpu_custom_call.1']
    #allocation5 [shape = 's32[2]{0}', space=sflag, size = 0x8, scoped, tag = 'scoped memory for tpu_custom_call.1']
    #allocation6 [shape = 'u8[32768]{0}', space=vmem, size = 0x8000, scoped, tag = 'input window, operand 1, single buffered']
    #allocation7 [shape = 's32[1]{0}', space=sflag, size = 0x4, scoped, tag = 'scoped memory for tpu_custom_call.1']
    #allocation8 [shape = 'u8[131072]{0}', space=vmem, size = 0x20000, scoped, tag = 'output window, operand 0']
    %8 = vsyncpa [#allocation4], 0
    %s9 = scalar_lea.sflag [#allocation4], 1
    %10 = vsyncpa %s9, 0
    %11 = vsyncpa [#allocation7], 0
    %12 = vsyncpa [#allocation5], 0
    %s13 = scalar_lea.sflag [#allocation5], 1
    %14 = vsyncpa %s13, 0
    loop: start=0, step=1, limit=6
    $region2: #{tpu_custom_call.1} parent=1 // loop_pre_header
      _
    $region3: #{tpu_custom_call.1} parent=1 // loop_header
      %s16 = sphi 0, %s20
      %p17 = scmp.ge.s32.totalorder %s16, 6
      %s23 = sphi 0, %s35
      %s24 = sphi 0, %s31
      %s25 = sphi 0, %s23
      %s26 = sphi 0, %s24
      %s27 = sphi 0, %s25
      %s28 = sphi 0, %s26
      %s40 = sphi 0, %s42
      %s43 = sphi 0, %s40
      %s44 = sphi 0, %s43
      %s60 = sphi 0, %s44
      %s66 = sphi 0, %s68
      %s69 = sphi 0, %s66
      %s70 = sphi 0, %s69
      %s86 = sphi 0, %s70
      %s90 = sphi 0, %s90
      %s92 = sphi 0, %s90
      %s93 = sphi 0, %s92
      %s107 = sphi 0, %s93
      %s113 = sphi 0, %s115
      %s116 = sphi 0, %s113
      %s117 = sphi 0, %s116
      %s133 = sphi 0, %s117
    $region4: #{tpu_custom_call.1} parent=1 // loop_header_branch
      %19 = sbr.rel (%p17) target = $region8
    $region5: #{tpu_custom_call.1} parent=1 // loop_body
      %s21 = ssub.s32 %s16, 1
      %s22 = ssub.s32 %s16, 2
      %s29 = sadd.s32 1, %s24
      %p30 = scmp.ge.s32.totalorder %s29, 1
      %s31 = scalar_select %p30, 0, %s29
      %s32 = sadd.s32 1, %s23
      %s33 = scalar_select %p30, %s32, %s23
      %p34 = scmp.ge.s32.totalorder %s33, 4
      %s35 = scalar_select %p34, 0, %s33
      %s36 = ssub.s32 %s23, %s35
      %s37 = ssub.s32 %s24, %s31
      %s38 = sor.u32 %s36, %s37
      %p39 = scmp.eq.s32.totalorder %s38, 0
      %s41 = sadd.s32 %s40, 1
      %s42 = scalar_select %p39, %s40, %s41
      %p45 = pneg %p39
      %p46 = scmp.eq.s32.totalorder %s16, 3
      %p47 = por %p45, %p46
      %p48 = scmp.ne.s32.totalorder %s40, %s43
      %p49 = scmp.eq.s32.totalorder %s16, 0
      %p50 = por %p48, %p49
      %p51 = scmp.ne.s32.totalorder %s40, %s43
      %p52 = scmp.eq.s32.totalorder %s21, 3
      %p53 = por %p51, %p52
      %p54 = scmp.ne.s32.totalorder %s43, %s44
      %p55 = scmp.eq.s32.totalorder %s21, 0
      %p56 = por %p54, %p55
      %p57 = scmp.ne.s32.totalorder %s43, %s44
      %p58 = scmp.eq.s32.totalorder %s22, 3
      %p59 = por %p57, %p58
      %p61 = scmp.ne.s32.totalorder %s44, %s60
      %p62 = scmp.eq.s32.totalorder %s22, 0
      %p63 = por %p61, %p62
      %s64 = ssub.s32 %s24, %s31
      %p65 = scmp.eq.s32.totalorder %s64, 0
      %s67 = sadd.s32 %s66, 1
      %s68 = scalar_select %p65, %s66, %s67
      %p71 = pneg %p65
      %p72 = scmp.eq.s32.totalorder %s16, 3
      %p73 = por %p71, %p72
      %p74 = scmp.ne.s32.totalorder %s66, %s69
      %p75 = scmp.eq.s32.totalorder %s16, 0
      %p76 = por %p74, %p75
      %p77 = scmp.ne.s32.totalorder %s66, %s69
      %p78 = scmp.eq.s32.totalorder %s21, 3
      %p79 = por %p77, %p78
      %p80 = scmp.ne.s32.totalorder %s69, %s70
      %p81 = scmp.eq.s32.totalorder %s21, 0
      %p82 = por %p80, %p81
      %p83 = scmp.ne.s32.totalorder %s69, %s70
      %p84 = scmp.eq.s32.totalorder %s22, 3
      %p85 = por %p83, %p84
      %p87 = scmp.ne.s32.totalorder %s70, %s86
      %p88 = scmp.eq.s32.totalorder %s22, 0
      %p89 = por %p87, %p88
      %s91 = sadd.s32 %s90, 1
      %p94 = scmp.eq.s32.totalorder %s16, 3
      %p95 = scmp.ne.s32.totalorder %s90, %s92
      %p96 = scmp.eq.s32.totalorder %s16, 0
      %p97 = por %p95, %p96
      %p98 = scmp.ne.s32.totalorder %s90, %s92
      %p99 = scmp.eq.s32.totalorder %s21, 3
      %p100 = por %p98, %p99
      %p101 = scmp.ne.s32.totalorder %s92, %s93
      %p102 = scmp.eq.s32.totalorder %s21, 0
      %p103 = por %p101, %p102
      %p104 = scmp.ne.s32.totalorder %s92, %s93
      %p105 = scmp.eq.s32.totalorder %s22, 3
      %p106 = por %p104, %p105
      %p108 = scmp.ne.s32.totalorder %s93, %s107
      %p109 = scmp.eq.s32.totalorder %s22, 0
      %p110 = por %p108, %p109
      %s111 = ssub.s32 %s23, %s35
      %p112 = scmp.eq.s32.totalorder %s111, 0
      %s114 = sadd.s32 %s113, 1
      %s115 = scalar_select %p112, %s113, %s114
      %p118 = pneg %p112
      %p119 = scmp.eq.s32.totalorder %s16, 3
      %p120 = por %p118, %p119
      %p121 = scmp.ne.s32.totalorder %s113, %s116
      %p122 = scmp.eq.s32.totalorder %s16, 0
      %p123 = por %p121, %p122
      %p124 = scmp.ne.s32.totalorder %s113, %s116
      %p125 = scmp.eq.s32.totalorder %s21, 3
      %p126 = por %p124, %p125
      %p127 = scmp.ne.s32.totalorder %s116, %s117
      %p128 = scmp.eq.s32.totalorder %s21, 0
      %p129 = por %p127, %p128
      %p130 = scmp.ne.s32.totalorder %s116, %s117
      %p131 = scmp.eq.s32.totalorder %s22, 3
      %p132 = por %p130, %p131
      %p134 = scmp.ne.s32.totalorder %s117, %s133
      %p135 = scmp.eq.s32.totalorder %s22, 0
      %p136 = por %p134, %p135
      %p137 = scmp.le.s32.totalorder 1, %s16
      %p138 = scmp.lt.s32.totalorder %s16, 5
      %p139 = pnand %p137, %p138
      %p140 = pneg %p139
      // Predicated region
      $region9: #{tpu_custom_call.1} parent=5 // pred_check
        _
      $region10: #{tpu_custom_call.1} parent=5 // pred_check_branch
        %142 = sbr.rel (%p139) target = $region12
      $region11: #{tpu_custom_call.1} parent=5 // pred_region
        %s143 = ssub.s32 %s16, 1
        // Predicated region
        $region13: #{tpu_custom_call.1} parent=11 // pred_check
          %p144 = pneg %p82
        $region14: #{tpu_custom_call.1} parent=11 // pred_check_branch
          %146 = sbr.rel (%p144) target = $region16
        $region15: #{tpu_custom_call.1} parent=11 // pred_region
          %s147 = smul.u32 16, %s26
          %s149 = ssub.s32 1024, 1024
          %150 = vsyncadd [#allocation7], %s149
          %s151 = smul.addr %s147, 64
          %s152 = scalar_lea.hbm %s1, %s151
          %s153 = sshll.u32 [#allocation6], 4
          %s154 = int_to_ptr.vmem [resolvable:$true] %s153
          %159 = dma.hbm_to_vmem [thread:$0]  %s152, 1024, %s154, [#allocation7], 64, 64, 4
        $region16: #{tpu_custom_call.1} parent=11 // pred_fallthru
          _
        // Predicated region
        $region17: #{tpu_custom_call.1} parent=11 // pred_check
          %p160 = pneg %p103
        $region18: #{tpu_custom_call.1} parent=11 // pred_check_branch
          %162 = sbr.rel (%p160) target = $region20
        $region19: #{tpu_custom_call.1} parent=11 // pred_region
          _
        $region20: #{tpu_custom_call.1} parent=11 // pred_fallthru
          _
      $region12: #{tpu_custom_call.1} parent=5 // pred_fallthru
        _
      %p163 = scmp.lt.s32.totalorder %s16, 4
      // Predicated region
      $region21: #{tpu_custom_call.1} parent=5 // pred_check
        %p164 = pneg %p163
      $region22: #{tpu_custom_call.1} parent=5 // pred_check_branch
        %166 = sbr.rel (%p164) target = $region24
      $region23: #{tpu_custom_call.1} parent=5 // pred_region
        // Predicated region
        $region25: #{tpu_custom_call.1} parent=23 // pred_check
          %p167 = pneg %p50
        $region26: #{tpu_custom_call.1} parent=23 // pred_check_branch
          %169 = sbr.rel (%p167) target = $region28
        $region27: #{tpu_custom_call.1} parent=23 // pred_region
          %s170 = sand.u32 %s40, 1
          %s171 = scalar_lea.sflag [#allocation4], %s170
          %s172 = sand.u32 %s40, 1
          %s173 = smul.addr %s172, 64
          %s174 = scalar_lea.vmem [#allocation3], %s173
          %s175 = smul.u32 16, %s23
          %s177 = ssub.s32 1024, 1024
          %178 = vsyncadd %s171, %s177
          %s179 = sadd.s32 %s24, %s175
          %s180 = smul.addr %s179, 64
          %s181 = scalar_lea.hbm %s0, %s180
          %s182 = sshll.u32 %s174, 4
          %s183 = int_to_ptr.vmem [resolvable:$true] %s182
          %188 = dma.hbm_to_vmem [thread:$0]  %s181, 1024, %s183, %s171, 64, 64, 4
        $region28: #{tpu_custom_call.1} parent=23 // pred_fallthru
          _
      $region24: #{tpu_custom_call.1} parent=5 // pred_fallthru
        _
      %p189 = scmp.le.s32.totalorder 1, %s16
      %p190 = scmp.lt.s32.totalorder %s16, 5
      %p191 = pnand %p189, %p190
      %p192 = pneg %p191
      // Predicated region
      $region29: #{tpu_custom_call.1} parent=5 // pred_check
        _
      $region30: #{tpu_custom_call.1} parent=5 // pred_check_branch
        %194 = sbr.rel (%p191) target = $region32
      $region31: #{tpu_custom_call.1} parent=5 // pred_region
        %s195 = ssub.s32 %s16, 1
        %s196 = sand.u32 %s43, 1
        %s197 = scalar_lea.sflag [#allocation4], %s196
        %s198 = sand.u32 %s43, 1
        %s199 = smul.addr %s198, 64
        %s200 = scalar_lea.vmem [#allocation3], %s199
        // Predicated region
        $region33: #{tpu_custom_call.1} parent=31 // pred_check
          %p201 = pneg %p56
        $region34: #{tpu_custom_call.1} parent=31 // pred_check_branch
          %203 = sbr.rel (%p201) target = $region36
        $region35: #{tpu_custom_call.1} parent=31 // pred_region
          %204 = dma.done %s197, 1024
        $region36: #{tpu_custom_call.1} parent=31 // pred_fallthru
          _
        // Predicated region
        $region37: #{tpu_custom_call.1} parent=31 // pred_check
          %p205 = pneg %p82
        $region38: #{tpu_custom_call.1} parent=31 // pred_check_branch
          %207 = sbr.rel (%p205) target = $region40
        $region39: #{tpu_custom_call.1} parent=31 // pred_region
          %208 = dma.done [#allocation7], 1024
        $region40: #{tpu_custom_call.1} parent=31 // pred_fallthru
          _
        %s209 = sand.u32 %s43, 1
        %s210 = scalar_lea.sflag [#allocation4], %s209
        %s211 = sand.u32 %s43, 1
        %s212 = smul.addr %s211, 64
        %s213 = scalar_lea.vmem [#allocation3], %s212
        %p214 = pneg %p56
        %p215 = pneg %p53
        %p216 = pneg %p82
        %p217 = pneg %p79
        %p218 = pneg %p103
        %p219 = pneg %p100
        %p220 = pneg %p129
        %p221 = pneg %p126
        %s222 = sand.u32 %s116, 1
        %s223 = scalar_lea.sflag [#allocation5], %s222
        %s224 = sand.u32 %s116, 1
        %s225 = smul.addr %s224, 128
        %s226 = scalar_lea.vmem [#allocation8], %s225
        %s227 = smul.u32 16, %s25
        %s228 = smul.u32 16, %s26
        %s229 = smul.u32 16, %s25
        %p231 = scmp.eq.s32.totalorder %s26, 0
        // Predicated region
        $region41: #{tpu_custom_call.1} parent=31 // pred_check
          %p232 = pneg %p231
        $region42: #{tpu_custom_call.1} parent=31 // pred_check_branch
          %234 = sbr.rel (%p232) target = $region44
        $region43: #{tpu_custom_call.1} parent=31 // pred_region
          %235 = vst [vmem:[#allocation2] sm:$0xff] 0.0
          %236 = vst [vmem:[#allocation2 + $0x8] sm:$0xff] 0.0
          %237 = vst [vmem:[#allocation2 + $0x10] sm:$0xff] 0.0
          %238 = vst [vmem:[#allocation2 + $0x18] sm:$0xff] 0.0
          %239 = vst [vmem:[#allocation2 + $0x20] sm:$0xff] 0.0
          %240 = vst [vmem:[#allocation2 + $0x28] sm:$0xff] 0.0
          %241 = vst [vmem:[#allocation2 + $0x30] sm:$0xff] 0.0
          %242 = vst [vmem:[#allocation2 + $0x38] sm:$0xff] 0.0
          %243 = vst [vmem:[#allocation2 + $0x40] sm:$0xff] 0.0
          %244 = vst [vmem:[#allocation2 + $0x48] sm:$0xff] 0.0
          %245 = vst [vmem:[#allocation2 + $0x50] sm:$0xff] 0.0
          %246 = vst [vmem:[#allocation2 + $0x58] sm:$0xff] 0.0
          %247 = vst [vmem:[#allocation2 + $0x60] sm:$0xff] 0.0
          %248 = vst [vmem:[#allocation2 + $0x68] sm:$0xff] 0.0
          %249 = vst [vmem:[#allocation2 + $0x70] sm:$0xff] 0.0
          %250 = vst [vmem:[#allocation2 + $0x78] sm:$0xff] 0.0
        $region44: #{tpu_custom_call.1} parent=31 // pred_fallthru
          _
        %v251 = vld [vmem:[#allocation2] sm:$0xff]
        %v252 = vld [vmem:[#allocation2 + $0x8] sm:$0xff]
        %v253 = vld [vmem:[#allocation2 + $0x10] sm:$0xff]
        %v254 = vld [vmem:[#allocation2 + $0x18] sm:$0xff]
        %v255 = vld [vmem:[#allocation2 + $0x20] sm:$0xff]
        %v256 = vld [vmem:[#allocation2 + $0x28] sm:$0xff]
        %v257 = vld [vmem:[#allocation2 + $0x30] sm:$0xff]
        %v258 = vld [vmem:[#allocation2 + $0x38] sm:$0xff]
        %v259 = vld [vmem:[#allocation2 + $0x40] sm:$0xff]
        %v260 = vld [vmem:[#allocation2 + $0x48] sm:$0xff]
        %v261 = vld [vmem:[#allocation2 + $0x50] sm:$0xff]
        %v262 = vld [vmem:[#allocation2 + $0x58] sm:$0xff]
        %v263 = vld [vmem:[#allocation2 + $0x60] sm:$0xff]
        %v264 = vld [vmem:[#allocation2 + $0x68] sm:$0xff]
        %v265 = vld [vmem:[#allocation2 + $0x70] sm:$0xff]
        %v266 = vld [vmem:[#allocation2 + $0x78] sm:$0xff]
        %v267 = vld [vmem:[%s200] sm:$0xf]
        %v268 = vld [vmem:[%s200 + $0x4] sm:$0xf]
        %v269 = vld [vmem:[%s200 + $0x8] sm:$0xf]
        %v270 = vld [vmem:[%s200 + $0xc] sm:$0xf]
        %v271 = vld [vmem:[%s200 + $0x10] sm:$0xf]
        %v272 = vld [vmem:[%s200 + $0x14] sm:$0xf]
        %v273 = vld [vmem:[%s200 + $0x18] sm:$0xf]
        %v274 = vld [vmem:[%s200 + $0x1c] sm:$0xf]
        %v275 = vld [vmem:[%s200 + $0x20] sm:$0xf]
        %v276 = vld [vmem:[%s200 + $0x24] sm:$0xf]
        %v277 = vld [vmem:[%s200 + $0x28] sm:$0xf]
        %v278 = vld [vmem:[%s200 + $0x2c] sm:$0xf]
        %v279 = vld [vmem:[%s200 + $0x30] sm:$0xf]
        %v280 = vld [vmem:[%s200 + $0x34] sm:$0xf]
        %v281 = vld [vmem:[%s200 + $0x38] sm:$0xf]
        %v282 = vld [vmem:[%s200 + $0x3c] sm:$0xf]
        %v283 = vld [vmem:[#allocation6] sm:$0xf]
        %v284 = vld [vmem:[#allocation6 + $0x4] sm:$0xf]
        %v285 = vld [vmem:[#allocation6 + $0x8] sm:$0xf]
        %v286 = vld [vmem:[#allocation6 + $0xc] sm:$0xf]
        %v287 = vld [vmem:[#allocation6 + $0x10] sm:$0xf]
        %v288 = vld [vmem:[#allocation6 + $0x14] sm:$0xf]
        %v289 = vld [vmem:[#allocation6 + $0x18] sm:$0xf]
        %v290 = vld [vmem:[#allocation6 + $0x1c] sm:$0xf]
        %v291 = vld [vmem:[#allocation6 + $0x20] sm:$0xf]
        %v292 = vld [vmem:[#allocation6 + $0x24] sm:$0xf]
        %v293 = vld [vmem:[#allocation6 + $0x28] sm:$0xf]
        %v294 = vld [vmem:[#allocation6 + $0x2c] sm:$0xf]
        %v295 = vld [vmem:[#allocation6 + $0x30] sm:$0xf]
        %v296 = vld [vmem:[#allocation6 + $0x34] sm:$0xf]
        %v297 = vld [vmem:[#allocation6 + $0x38] sm:$0xf]
        %v298 = vld [vmem:[#allocation6 + $0x3c] sm:$0xf]
        %v315 = vunpack.c.l.b16 %v267
        %v316 = vunpack.c.l.b16 %v268
        %v317 = vunpack.c.l.b16 %v269
        %v318 = vunpack.c.l.b16 %v270
        %v319 = vunpack.c.l.b16 %v271
        %v320 = vunpack.c.l.b16 %v272
        %v321 = vunpack.c.l.b16 %v273
        %v322 = vunpack.c.l.b16 %v274
        %v323 = vunpack.c.l.b16 %v275
        %v324 = vunpack.c.l.b16 %v276
        %v325 = vunpack.c.l.b16 %v277
        %v326 = vunpack.c.l.b16 %v278
        %v327 = vunpack.c.l.b16 %v279
        %v328 = vunpack.c.l.b16 %v280
        %v329 = vunpack.c.l.b16 %v281
        %v330 = vunpack.c.l.b16 %v282
        %v331 = vpack.c.b16 %v316, %v315
        %v332 = vpack.c.b16 %v318, %v317
        %v333 = vpack.c.b16 %v320, %v319
        %v334 = vpack.c.b16 %v322, %v321
        %v335 = vpack.c.b16 %v324, %v323
        %v336 = vpack.c.b16 %v326, %v325
        %v337 = vpack.c.b16 %v328, %v327
        %v338 = vpack.c.b16 %v330, %v329
        %v363 = vunpack.c.l.b16 %v283
        %v364 = vunpack.c.l.b16 %v284
        %v365 = vunpack.c.l.b16 %v285
        %v366 = vunpack.c.l.b16 %v286
        %v367 = vunpack.c.l.b16 %v287
        %v368 = vunpack.c.l.b16 %v288
        %v369 = vunpack.c.l.b16 %v289
        %v370 = vunpack.c.l.b16 %v290
        %v371 = vunpack.c.l.b16 %v291
        %v372 = vunpack.c.l.b16 %v292
        %v373 = vunpack.c.l.b16 %v293
        %v374 = vunpack.c.l.b16 %v294
        %v375 = vunpack.c.l.b16 %v295
        %v376 = vunpack.c.l.b16 %v296
        %v377 = vunpack.c.l.b16 %v297
        %v378 = vunpack.c.l.b16 %v298
        %v379 = vpack.c.b16 %v364, %v363
        %v380 = vpack.c.b16 %v366, %v365
        %v381 = vpack.c.b16 %v368, %v367
        %v382 = vpack.c.b16 %v370, %v369
        %v383 = vpack.c.b16 %v372, %v371
        %v384 = vpack.c.b16 %v374, %v373
        %v385 = vpack.c.b16 %v376, %v375
        %v386 = vpack.c.b16 %v378, %v377
        %395 = vmatprep.subr.bf16.mxu0 0
        %396 = vmatpush1.bf16.msra.mxu0 %v386
        %397 = vmatprep.subr.bf16.mxu0 0
        %398 = vmatpush1.bf16.msra.mxu0 %v385
        %399 = vmatprep.subr.bf16.mxu0 0
        %400 = vmatpush1.bf16.msra.mxu0 %v384
        %401 = vmatprep.subr.bf16.mxu0 0
        %402 = vmatpush1.bf16.msra.mxu0 %v383
        %403 = vmatprep.subr.bf16.mxu0 0
        %404 = vmatpush1.bf16.msra.mxu0 %v382
        %405 = vmatprep.subr.bf16.mxu0 0
        %406 = vmatpush1.bf16.msra.mxu0 %v381
        %407 = vmatprep.subr.bf16.mxu0 0
        %408 = vmatpush1.bf16.msra.mxu0 %v380
        %409 = vmatprep.subr.bf16.mxu0 0
        %410 = vmatpush1.bf16.msra.mxu0 %v379
        %411 = vmatprep.subr.bf16.mxu0 0
        %412 = vmatpush2.bf16.msra.mxu0 0
        %413 = vmatprep.subr.bf16.mxu0 0
        %414 = vmatpush2.bf16.msra.mxu0 0
        %415 = vmatprep.subr.bf16.mxu0 0
        %416 = vmatpush2.bf16.msra.mxu0 0
        %417 = vmatprep.subr.bf16.mxu0 0
        %418 = vmatpush2.bf16.msra.mxu0 0
        %419 = vmatprep.subr.bf16.mxu0 0
        %420 = vmatpush2.bf16.msra.mxu0 0
        %421 = vmatprep.subr.bf16.mxu0 0
        %422 = vmatpush2.bf16.msra.mxu0 0
        %423 = vmatprep.subr.bf16.mxu0 0
        %424 = vmatpush2.bf16.msra.mxu0 0
        %425 = vmatprep.subr.bf16.mxu0 0
        %426 = vmatpush2.bf16.msra.mxu0 0
        %427 = vmatprep.mubr.bf16.mxu0 0
        %428 = vmatmul.mubr.bf16.gmra.mxu0 %v331
        %v429 = vpop.f32.mrf.mxu0
        %v430 = vadd.f32 0.0, %v429
        %v431 = vpop.f32.mrf.mxu0
        %v432 = vpop.f32.mrf.mxu0
        %v433 = vadd.f32 0.0, %v432
        %v434 = vpop.f32.mrf.mxu0
        %435 = vmatprep.mubr.bf16.mxu0 0
        %436 = vmatmul.mubr.bf16.gmra.mxu0 %v332
        %v437 = vpop.f32.mrf.mxu0
        %v438 = vadd.f32 0.0, %v437
        %v439 = vpop.f32.mrf.mxu0
        %v440 = vpop.f32.mrf.mxu0
        %v441 = vadd.f32 0.0, %v440
        %v442 = vpop.f32.mrf.mxu0
        %443 = vmatprep.mubr.bf16.mxu0 0
        %444 = vmatmul.mubr.bf16.gmra.mxu0 %v333
        %v445 = vpop.f32.mrf.mxu0
        %v446 = vadd.f32 0.0, %v445
        %v447 = vpop.f32.mrf.mxu0
        %v448 = vpop.f32.mrf.mxu0
        %v449 = vadd.f32 0.0, %v448
        %v450 = vpop.f32.mrf.mxu0
        %451 = vmatprep.mubr.bf16.mxu0 0
        %452 = vmatmul.mubr.bf16.gmra.mxu0 %v334
        %v453 = vpop.f32.mrf.mxu0
        %v454 = vadd.f32 0.0, %v453
        %v455 = vpop.f32.mrf.mxu0
        %v456 = vpop.f32.mrf.mxu0
        %v457 = vadd.f32 0.0, %v456
        %v458 = vpop.f32.mrf.mxu0
        %459 = vmatprep.mubr.bf16.mxu0 0
        %460 = vmatmul.mubr.bf16.gmra.mxu0 %v335
        %v461 = vpop.f32.mrf.mxu0
        %v462 = vadd.f32 0.0, %v461
        %v463 = vpop.f32.mrf.mxu0
        %v464 = vpop.f32.mrf.mxu0
        %v465 = vadd.f32 0.0, %v464
        %v466 = vpop.f32.mrf.mxu0
        %467 = vmatprep.mubr.bf16.mxu0 0
        %468 = vmatmul.mubr.bf16.gmra.mxu0 %v336
        %v469 = vpop.f32.mrf.mxu0
        %v470 = vadd.f32 0.0, %v469
        %v471 = vpop.f32.mrf.mxu0
        %v472 = vpop.f32.mrf.mxu0
        %v473 = vadd.f32 0.0, %v472
        %v474 = vpop.f32.mrf.mxu0
        %475 = vmatprep.mubr.bf16.mxu0 0
        %476 = vmatmul.mubr.bf16.gmra.mxu0 %v337
        %v477 = vpop.f32.mrf.mxu0
        %v478 = vadd.f32 0.0, %v477
        %v479 = vpop.f32.mrf.mxu0
        %v480 = vpop.f32.mrf.mxu0
        %v481 = vadd.f32 0.0, %v480
        %v482 = vpop.f32.mrf.mxu0
        %483 = vmatprep.mubr.bf16.mxu0 0
        %484 = vmatmul.mubr.bf16.gmra.mxu0 %v338
        %v485 = vpop.f32.mrf.mxu0
        %v486 = vadd.f32 0.0, %v485
        %v487 = vpop.f32.mrf.mxu0
        %v488 = vpop.f32.mrf.mxu0
        %v489 = vadd.f32 0.0, %v488
        %v490 = vpop.f32.mrf.mxu0
        %491 = vdwg.mxu0
        %v492 = vadd.f32 %v251, %v430
        %v493 = vadd.f32 %v252, %v433
        %v494 = vadd.f32 %v253, %v438
        %v495 = vadd.f32 %v254, %v441
        %v496 = vadd.f32 %v255, %v446
        %v497 = vadd.f32 %v256, %v449
        %v498 = vadd.f32 %v257, %v454
        %v499 = vadd.f32 %v258, %v457
        %v500 = vadd.f32 %v259, %v462
        %v501 = vadd.f32 %v260, %v465
        %v502 = vadd.f32 %v261, %v470
        %v503 = vadd.f32 %v262, %v473
        %v504 = vadd.f32 %v263, %v478
        %v505 = vadd.f32 %v264, %v481
        %v506 = vadd.f32 %v265, %v486
        %v507 = vadd.f32 %v266, %v489
        %508 = vst [vmem:[#allocation2] sm:$0xff] %v492
        %509 = vst [vmem:[#allocation2 + $0x8] sm:$0xff] %v493
        %510 = vst [vmem:[#allocation2 + $0x10] sm:$0xff] %v494
        %511 = vst [vmem:[#allocation2 + $0x18] sm:$0xff] %v495
        %512 = vst [vmem:[#allocation2 + $0x20] sm:$0xff] %v496
        %513 = vst [vmem:[#allocation2 + $0x28] sm:$0xff] %v497
        %514 = vst [vmem:[#allocation2 + $0x30] sm:$0xff] %v498
        %515 = vst [vmem:[#allocation2 + $0x38] sm:$0xff] %v499
        %516 = vst [vmem:[#allocation2 + $0x40] sm:$0xff] %v500
        %517 = vst [vmem:[#allocation2 + $0x48] sm:$0xff] %v501
        %518 = vst [vmem:[#allocation2 + $0x50] sm:$0xff] %v502
        %519 = vst [vmem:[#allocation2 + $0x58] sm:$0xff] %v503
        %520 = vst [vmem:[#allocation2 + $0x60] sm:$0xff] %v504
        %521 = vst [vmem:[#allocation2 + $0x68] sm:$0xff] %v505
        %522 = vst [vmem:[#allocation2 + $0x70] sm:$0xff] %v506
        %523 = vst [vmem:[#allocation2 + $0x78] sm:$0xff] %v507
        // Predicated region
        $region45: #{tpu_custom_call.1} parent=31 // pred_check
          %p524 = pneg %p231
        $region46: #{tpu_custom_call.1} parent=31 // pred_check_branch
          %526 = sbr.rel (%p524) target = $region48
        $region47: #{tpu_custom_call.1} parent=31 // pred_region
          %v527 = vld [vmem:[#allocation2] sm:$0xff]
          %v528 = vld [vmem:[#allocation2 + $0x8] sm:$0xff]
          %v529 = vld [vmem:[#allocation2 + $0x10] sm:$0xff]
          %v530 = vld [vmem:[#allocation2 + $0x18] sm:$0xff]
          %v531 = vld [vmem:[#allocation2 + $0x20] sm:$0xff]
          %v532 = vld [vmem:[#allocation2 + $0x28] sm:$0xff]
          %v533 = vld [vmem:[#allocation2 + $0x30] sm:$0xff]
          %v534 = vld [vmem:[#allocation2 + $0x38] sm:$0xff]
          %v535 = vld [vmem:[#allocation2 + $0x40] sm:$0xff]
          %v536 = vld [vmem:[#allocation2 + $0x48] sm:$0xff]
          %v537 = vld [vmem:[#allocation2 + $0x50] sm:$0xff]
          %v538 = vld [vmem:[#allocation2 + $0x58] sm:$0xff]
          %v539 = vld [vmem:[#allocation2 + $0x60] sm:$0xff]
          %v540 = vld [vmem:[#allocation2 + $0x68] sm:$0xff]
          %v541 = vld [vmem:[#allocation2 + $0x70] sm:$0xff]
          %v542 = vld [vmem:[#allocation2 + $0x78] sm:$0xff]
          %v543 = vld [vmem:[%s2] sm:$0x1]
          %v545 = vlaneseq
          %v546 = vshrl.u32 %v545, 7
          %v547 = vsub.s32 0, %v546
          %v548 = vrot.slane %v543, %v547
          %v550 = vadd.f32 %v527, %v548
          %v551 = vadd.f32 %v528, %v548
          %v552 = vadd.f32 %v529, %v548
          %v553 = vadd.f32 %v530, %v548
          %v554 = vadd.f32 %v531, %v548
          %v555 = vadd.f32 %v532, %v548
          %v556 = vadd.f32 %v533, %v548
          %v557 = vadd.f32 %v534, %v548
          %v558 = vadd.f32 %v535, %v548
          %v559 = vadd.f32 %v536, %v548
          %v560 = vadd.f32 %v537, %v548
          %v561 = vadd.f32 %v538, %v548
          %v562 = vadd.f32 %v539, %v548
          %v563 = vadd.f32 %v540, %v548
          %v564 = vadd.f32 %v541, %v548
          %v565 = vadd.f32 %v542, %v548
          %566 = vst [vmem:[%s226] sm:$0xff] %v550
          %567 = vst [vmem:[%s226 + $0x8] sm:$0xff] %v551
          %568 = vst [vmem:[%s226 + $0x10] sm:$0xff] %v552
          %569 = vst [vmem:[%s226 + $0x18] sm:$0xff] %v553
          %570 = vst [vmem:[%s226 + $0x20] sm:$0xff] %v554
          %571 = vst [vmem:[%s226 + $0x28] sm:$0xff] %v555
          %572 = vst [vmem:[%s226 + $0x30] sm:$0xff] %v556
          %573 = vst [vmem:[%s226 + $0x38] sm:$0xff] %v557
          %574 = vst [vmem:[%s226 + $0x40] sm:$0xff] %v558
          %575 = vst [vmem:[%s226 + $0x48] sm:$0xff] %v559
          %576 = vst [vmem:[%s226 + $0x50] sm:$0xff] %v560
          %577 = vst [vmem:[%s226 + $0x58] sm:$0xff] %v561
          %578 = vst [vmem:[%s226 + $0x60] sm:$0xff] %v562
          %579 = vst [vmem:[%s226 + $0x68] sm:$0xff] %v563
          %580 = vst [vmem:[%s226 + $0x70] sm:$0xff] %v564
          %581 = vst [vmem:[%s226 + $0x78] sm:$0xff] %v565
        $region48: #{tpu_custom_call.1} parent=31 // pred_fallthru
          _
        %s582 = sand.u32 %s116, 1
        %s583 = scalar_lea.sflag [#allocation5], %s582
        %s584 = sand.u32 %s116, 1
        %s585 = smul.addr %s584, 128
        %s586 = scalar_lea.vmem [#allocation8], %s585
        // Predicated region
        $region49: #{tpu_custom_call.1} parent=31 // pred_check
          %p587 = pneg %p126
        $region50: #{tpu_custom_call.1} parent=31 // pred_check_branch
          %589 = sbr.rel (%p587) target = $region52
        $region51: #{tpu_custom_call.1} parent=31 // pred_region
          %s590 = smul.u32 16, %s25
          %s592 = ssub.s32 2048, 2048
          %593 = vsyncadd %s583, %s592
          %s594 = smul.addr %s590, 128
          %s595 = scalar_lea.hbm %s3, %s594
          %s596 = sshll.u32 %s586, 4
          %s597 = int_to_ptr.vmem [resolvable:$true] %s596
          %602 = dma.vmem_to_hbm [thread:$0]  %s597, 2048, %s595, %s583, 128, 128, 8
        $region52: #{tpu_custom_call.1} parent=31 // pred_fallthru
          _
      $region32: #{tpu_custom_call.1} parent=5 // pred_fallthru
        _
      %p603 = scmp.le.s32.totalorder 2, %s16
      // Predicated region
      $region53: #{tpu_custom_call.1} parent=5 // pred_check
        %p604 = pneg %p603
      $region54: #{tpu_custom_call.1} parent=5 // pred_check_branch
        %606 = sbr.rel (%p604) target = $region56
      $region55: #{tpu_custom_call.1} parent=5 // pred_region
        %s607 = ssub.s32 %s16, 2
        // Predicated region
        $region57: #{tpu_custom_call.1} parent=55 // pred_check
          %p608 = pneg %p132
        $region58: #{tpu_custom_call.1} parent=55 // pred_check_branch
          %610 = sbr.rel (%p608) target = $region60
        $region59: #{tpu_custom_call.1} parent=55 // pred_region
          %s611 = sand.u32 %s117, 1
          %s612 = scalar_lea.sflag [#allocation5], %s611
          %s613 = sand.u32 %s117, 1
          %s614 = smul.addr %s613, 128
          %s615 = scalar_lea.vmem [#allocation8], %s614
          %616 = dma.done %s612, 2048
        $region60: #{tpu_custom_call.1} parent=55 // pred_fallthru
          _
      $region56: #{tpu_custom_call.1} parent=5 // pred_fallthru
        _
    $region6: #{tpu_custom_call.1} parent=1 // loop_footer
      %s20 = sadd.s32 1, %s16
    $region7: #{tpu_custom_call.1} parent=1 // loop_footer_branch
      %15 = sbr.rel target = $region3
    $region8: #{tpu_custom_call.1} parent=1 // loop_exit
      _
    %617 = vsyncpa [#allocation4], 1
    %s618 = scalar_lea.sflag [#allocation4], 1
    %619 = vsyncpa %s618, 1
    %620 = vsyncpa [#allocation7], 1
    %621 = vsyncpa [#allocation5], 1
    %s622 = scalar_lea.sflag [#allocation5], 1
    %623 = vsyncpa %s622, 1

</llo_original>
